<compile_context>
chip_gen: v6e
topology: v6e:2x2x1
jax: 0.10.0
libtpu: 0.0.40
codegen_flags: <defaults>
</compile_context>

<pallas_src>
import functools
import math

import jax
import jax.numpy as jnp
import numpy as np
from jax.experimental import pallas as pl
from jax.experimental.pallas import tpu as pltpu


def _vfe_kernel(x_ref, cnt_ref, r_ref, o_ref, *, precision):
    # x_ref:   (T, W)      W = G*M*C lanes (multiple of 128), G voxels per row
    # cnt_ref: (T, G*Cp)   f32 valid-point count, already broadcast per channel
    # r_ref:   (W, G*Cp)   constant 0/1 selection matrix (resident across steps)
    # o_ref:   (T, G*Cp)
    x = x_ref[...]
    # One MXU op: strided sum over the M points of each packed voxel, voxel
    # compaction within the row and the ":4" channel slice, accumulated in f32.
    sums = jnp.dot(
        x,
        r_ref[...],
        preferred_element_type=jnp.float32,
        precision=precision,
    )
    # Mean: guard empty voxels, approximate reciprocal on the EUP + one
    # Newton-Raphson step so accuracy is back to ~f32 (exact-division parity).
    cnt = jnp.maximum(cnt_ref[...], 1.0)
    inv = pl.reciprocal(cnt, approx=True)
    inv = inv * (2.0 - cnt * inv)
    o_ref[...] = (sums * inv).astype(o_ref.dtype)


def hard_simple_vfe(features, num_points, coors=None, *,
                    target_block_bytes=2 * 1024 * 1024):
    """Average the (first 4 channels of the) points inside each voxel.

    Args:
        features:   (N, M, C) float array.
        num_points: (N,) int/float array of valid-point counts.
        coors:      unused (API parity with the PyTorch module).

    Returns:
        (N, min(C, 4)) array of per-voxel point means, dtype of `features`.
    """
    del coors  # unused, as in the reference module
    N, M, C = features.shape
    Cp = min(C, 4)
    MC = M * C
    # Pack G voxels per row so the lane (minor) dimension is a multiple of 128.
    G = 128 // math.gcd(MC, 128)
    W = G * MC

    n_pad = (-N) % G
    if n_pad:
        # TODO(synk): have the voxelizer pad N to a multiple of G so this
        # full-array pad copy disappears for N not divisible by G.
        features = jnp.pad(features, ((0, n_pad), (0, 0), (0, 0)))
        num_points = jnp.pad(num_points, (0, n_pad), constant_values=1)
    Np = N + n_pad
    rows = Np // G

    # Lane-dense view of the point features: pure metadata reshape, no HBM copy,
    # and no wrapper channel-slice copy for C > 4 (R selects channels instead).
    x = features.reshape(rows, W)

    # Valid-point counts, cast straight to f32 (never rounded through bf16) and
    # broadcast to one value per output column: cnt[r, g*Cp + c] = n[r*G + g].
    cnt = jnp.repeat(num_points.astype(jnp.float32).reshape(rows, G), Cp, axis=1)

    # Constant 0/1 selection matrix: column k = g*Cp + c sums input lanes
    # j = g*MC + m*C + c over m (and drops channels >= 4 when C > 4).
    # TODO(synk): when M*C shares no factor with 128 (G = 128) and M*C is
    # large, this constant grows as G^2*M*C*Cp and could exceed VMEM; such
    # shapes would need a fallback (N, M*C)-blocked layout.
    j = np.arange(W)
    k = np.arange(G * Cp)
    r_np = (
        (j[:, None] // MC == k[None, :] // Cp)
        & (j[:, None] % C == k[None, :] % Cp)
    ).astype(np.float32)
    r_mat = jnp.asarray(r_np, dtype=features.dtype)

    # Exact f32 sums for f32 inputs; bf16 inputs already multiply exactly by 0/1.
    precision = (
        jax.lax.Precision.HIGHEST
        if features.dtype == jnp.float32
        else jax.lax.Precision.DEFAULT
    )

    # Tile size: aim for ~target_block_bytes of feature payload per grid step
    # (amortizes the fixed ~0.35us/step pipeline overhead), but also keep at
    # least ~4 grid steps when rows permit so the input DMA / MXU compute /
    # writeback actually overlap and both v7x TensorCores get work.
    row_bytes = W * features.dtype.itemsize
    budget_rows = max(8, (target_block_bytes // row_bytes) // 8 * 8)
    if rows <= 8:
        tile_rows = rows  # single block; row count equals the full array dim
    else:
        q = (rows + 3) // 4          # ~4 pipeline steps worth of rows
        q = ((q + 7) // 8) * 8       # sublane-aligned block height
        tile_rows = max(8, min(budget_rows, q))
    grid = (pl.cdiv(rows, tile_rows),)

    out = pl.pallas_call(
        functools.partial(_vfe_kernel, precision=precision),
        out_shape=jax.ShapeDtypeStruct((rows, G * Cp), features.dtype),
        grid_spec=pltpu.PrefetchScalarGridSpec(
            num_scalar_prefetch=0,
            grid=grid,
            in_specs=[
                pl.BlockSpec((tile_rows, W), lambda i: (i, 0)),
                pl.BlockSpec((tile_rows, G * Cp), lambda i: (i, 0)),
                pl.BlockSpec((W, G * Cp), lambda i: (0, 0)),  # resident constant
            ],
            out_specs=pl.BlockSpec((tile_rows, G * Cp), lambda i: (i, 0)),
        ),
        compiler_params=pltpu.CompilerParams(
            dimension_semantics=("parallel",),
            vmem_limit_bytes=32 * 1024 * 1024,
        ),
    )(x, cnt, r_mat)

    out = out.reshape(Np, Cp)  # free reshape back to one row per voxel
    if n_pad:
        out = out[:N]
    return out


def _reference(features, num_points):
    return jnp.sum(features[:, :, :4], axis=1) / num_points.astype(
        jnp.float32
    ).reshape(-1, 1)


if __name__ == "__main__":
    key = jax.random.PRNGKey(0)
    k1, k2 = jax.random.split(key)

    N, M, C = 512, 8, 4  # voxels, max points per voxel, channels (x, y, z, r)
    features = jax.random.normal(k1, (N, M, C), dtype=jnp.float32)
    # Valid-point counts in [1, M]; zero out the padded point slots like a real
    # hard-voxelization output would.
    num_points = jax.random.randint(k2, (N,), 1, M + 1, dtype=jnp.int32)
    point_mask = (jnp.arange(M)[None, :] < num_points[:, None]).astype(features.dtype)
    features = features * point_mask[:, :, None]
    coors = jnp.zeros((N, 4), dtype=jnp.int32)  # unused by the encoder

    out = hard_simple_vfe(features, num_points, coors)
    out = jax.block_until_ready(out)

    ref = _reference(features, num_points)
    assert out.shape == (N, min(C, 4)), out.shape
    assert jnp.allclose(out, ref, atol=1e-5, rtol=1e-5), float(
        jnp.max(jnp.abs(out - ref))
    )
    print("KERNEL_OK")
</pallas_src>

<mosaic_0001>
module attributes {stable_mosaic.version = 11 : i64} {
  func.func @_vfe_kernel(%arg0: i32, %arg1: memref<32x128xf32, #tpu.memory_space<vmem>>, %arg2: memref<32x16xf32, #tpu.memory_space<vmem>>, %arg3: memref<128x16xf32, #tpu.memory_space<vmem>>, %arg4: memref<32x16xf32, #tpu.memory_space<vmem>>) attributes {dimension_semantics = [#tpu.dimension_semantics<parallel>], iteration_bounds = array<i64: 4>, scalar_prefetch = 0 : i64, scratch_operands = 0 : i64, tpu.core_type = #tpu.core_type<tc>, window_params = [{transform_indices = @transform_0, window_bounds = array<i64: 32, 128>}, {transform_indices = @transform_1, window_bounds = array<i64: 32, 16>}, {pipeline_mode = #tpu.pipeline_mode<synchronous>, transform_indices = @transform_2, window_bounds = array<i64: 128, 16>}, {transform_indices = @transform_3, window_bounds = array<i64: 32, 16>}]} {
    %c0 = arith.constant 0 : index
    %c0_0 = arith.constant 0 : index
    %0 = vector.load %arg1[%c0, %c0_0] : memref<32x128xf32, #tpu.memory_space<vmem>>, vector<32x128xf32>
    %c0_1 = arith.constant 0 : index
    %c0_2 = arith.constant 0 : index
    %1 = vector.load %arg3[%c0_1, %c0_2] : memref<128x16xf32, #tpu.memory_space<vmem>>, vector<128x16xf32>
    %cst = arith.constant dense<0.000000e+00> : vector<32x16xf32>
    %2 = tpu.matmul %0, %1, %cst {dimension_numbers = #tpu.dot_dimension_numbers<[1], [0], [0], [1], [0, 0, 1, 1], [], []>, precision = #tpu.contract_precision<fp32>} : vector<32x128xf32>, vector<128x16xf32>, vector<32x16xf32> -> vector<32x16xf32>
    %c0_3 = arith.constant 0 : index
    %c0_4 = arith.constant 0 : index
    %3 = vector.load %arg2[%c0_3, %c0_4] : memref<32x16xf32, #tpu.memory_space<vmem>>, vector<32x16xf32>
    %cst_5 = arith.constant 1.000000e+00 : f32
    %4 = vector.broadcast %cst_5 : f32 to vector<32x16xf32>
    %5 = arith.maximumf %3, %4 : vector<32x16xf32>
    %6 = tpu.reciprocal %5 {approx = true} : vector<32x16xf32> -> vector<32x16xf32>
    %7 = arith.mulf %5, %6 : vector<32x16xf32>
    %cst_6 = arith.constant 2.000000e+00 : f32
    %8 = vector.broadcast %cst_6 : f32 to vector<32x16xf32>
    %9 = arith.subf %8, %7 : vector<32x16xf32>
    %10 = arith.mulf %6, %9 : vector<32x16xf32>
    %11 = arith.mulf %2, %10 : vector<32x16xf32>
    %c0_7 = arith.constant 0 : index
    %c0_8 = arith.constant 0 : index
    %12 = vector.load %arg4[%c0_7, %c0_8] : memref<32x16xf32, #tpu.memory_space<vmem>>, vector<32x16xf32>
    tpu.vector_store %arg4[%c0_7, %c0_8], %11 {strides = array<i32>} : memref<32x16xf32, #tpu.memory_space<vmem>>, vector<32x16xf32>,
    return
  }
  func.func @transform_0(%arg0: i32) -> (i32, i32) {
    %c0_i32 = arith.constant 0 : i32
    %c0_i32_0 = arith.constant 0 : i32
    return %arg0, %c0_i32 : i32, i32
  }
  func.func @transform_1(%arg0: i32) -> (i32, i32) {
    %c0_i32 = arith.constant 0 : i32
    %c0_i32_0 = arith.constant 0 : i32
    return %arg0, %c0_i32 : i32, i32
  }
  func.func @transform_2(%arg0: i32) -> (i32, i32) {
    %c0_i32 = arith.constant 0 : i32
    %c0_i32_0 = arith.constant 0 : i32
    %c0_i32_1 = arith.constant 0 : i32
    return %c0_i32, %c0_i32_0 : i32, i32
  }
  func.func @transform_3(%arg0: i32) -> (i32, i32) {
    %c0_i32 = arith.constant 0 : i32
    %c0_i32_0 = arith.constant 0 : i32
    return %arg0, %c0_i32 : i32, i32
  }
}

</mosaic_0001>

<llo_original>
// kernel: tpu_custom_call.1
$region0: #{tpu_custom_call.1}
  #allocation0 [shape = 'u32[]', space=smem, size = 0x4, offset = 0x4, fixed_abs, tag = 'smem constant byte address 0x4 - core index']
  #allocation1 [shape = 'u32[144,128]{1,0:T(1,128)}', space=vmem, size = 0x12000, scoped, tag = 'internal scratch']
  %s0 = inlined_call_operand.vmem [shape: f32[128,128], index: 0, kind: input, shape index: {}]
  %s1 = inlined_call_operand.vmem [shape: f32[128,16], index: 1, kind: input, shape index: {}]
  %s2 = inlined_call_operand.vmem [shape: f32[128,16], index: 2, kind: input, shape index: {}]
  %s3 = inlined_call_operand.vmem [shape: f32[128,16], index: 3, kind: output, shape index: {}]
  %s4 = sld [smem:[#allocation0]]
  $region45: #{tpu_custom_call.1} parent=0
    _
  %s6 = ssub.s32 1, %s4
  %s7 = scalar_select 0, %s6, %s4
  loop: start=0, step=1, limit=6
  $region2: #{tpu_custom_call.1} parent=0 // loop_pre_header
    _
  $region3: #{tpu_custom_call.1} parent=0 // loop_header
    %s9 = sphi 0, %s13
    %p10 = scmp.ge.s32.totalorder %s9, 6
    %s19 = sphi 0, %s21
    %s22 = sphi 0, %s19
    %s23 = sphi 0, %s22
    %s39 = sphi 0, %s23
    %s45 = sphi 0, %s47
    %s48 = sphi 0, %s45
    %s49 = sphi 0, %s48
    %s65 = sphi 0, %s49
    %s69 = sphi 0, %s69
    %s71 = sphi 0, %s69
    %s72 = sphi 0, %s71
    %s86 = sphi 0, %s72
    %s92 = sphi 0, %s94
    %s95 = sphi 0, %s92
    %s96 = sphi 0, %s95
    %s112 = sphi 0, %s96
  $region4: #{tpu_custom_call.1} parent=0 // loop_header_branch
    %12 = sbr.rel (%p10) target = $region8
  $region5: #{tpu_custom_call.1} parent=0 // loop_body
    %s14 = ssub.s32 %s9, 1
    %s15 = ssub.s32 %s9, 2
    %s16 = sadd.s32 %s9, 1
    %s17 = ssub.s32 %s9, %s16
    %p18 = scmp.eq.s32.totalorder %s17, 0
    %s20 = sadd.s32 %s19, 1
    %s21 = scalar_select %p18, %s19, %s20
    %p24 = pneg %p18
    %p25 = scmp.eq.s32.totalorder %s9, 3
    %p26 = por %p24, %p25
    %p27 = scmp.ne.s32.totalorder %s19, %s22
    %p28 = scmp.eq.s32.totalorder %s9, 0
    %p29 = por %p27, %p28
    %p30 = scmp.ne.s32.totalorder %s19, %s22
    %p31 = scmp.eq.s32.totalorder %s14, 3
    %p32 = por %p30, %p31
    %p33 = scmp.ne.s32.totalorder %s22, %s23
    %p34 = scmp.eq.s32.totalorder %s14, 0
    %p35 = por %p33, %p34
    %p36 = scmp.ne.s32.totalorder %s22, %s23
    %p37 = scmp.eq.s32.totalorder %s15, 3
    %p38 = por %p36, %p37
    %p40 = scmp.ne.s32.totalorder %s23, %s39
    %p41 = scmp.eq.s32.totalorder %s15, 0
    %p42 = por %p40, %p41
    %s43 = ssub.s32 %s9, %s16
    %p44 = scmp.eq.s32.totalorder %s43, 0
    %s46 = sadd.s32 %s45, 1
    %s47 = scalar_select %p44, %s45, %s46
    %p50 = pneg %p44
    %p51 = scmp.eq.s32.totalorder %s9, 3
    %p52 = por %p50, %p51
    %p53 = scmp.ne.s32.totalorder %s45, %s48
    %p54 = scmp.eq.s32.totalorder %s9, 0
    %p55 = por %p53, %p54
    %p56 = scmp.ne.s32.totalorder %s45, %s48
    %p57 = scmp.eq.s32.totalorder %s14, 3
    %p58 = por %p56, %p57
    %p59 = scmp.ne.s32.totalorder %s48, %s49
    %p60 = scmp.eq.s32.totalorder %s14, 0
    %p61 = por %p59, %p60
    %p62 = scmp.ne.s32.totalorder %s48, %s49
    %p63 = scmp.eq.s32.totalorder %s15, 3
    %p64 = por %p62, %p63
    %p66 = scmp.ne.s32.totalorder %s49, %s65
    %p67 = scmp.eq.s32.totalorder %s15, 0
    %p68 = por %p66, %p67
    %s70 = sadd.s32 %s69, 1
    %p73 = scmp.eq.s32.totalorder %s9, 3
    %p74 = scmp.ne.s32.totalorder %s69, %s71
    %p75 = scmp.eq.s32.totalorder %s9, 0
    %p76 = por %p74, %p75
    %p77 = scmp.ne.s32.totalorder %s69, %s71
    %p78 = scmp.eq.s32.totalorder %s14, 3
    %p79 = por %p77, %p78
    %p80 = scmp.ne.s32.totalorder %s71, %s72
    %p81 = scmp.eq.s32.totalorder %s14, 0
    %p82 = por %p80, %p81
    %p83 = scmp.ne.s32.totalorder %s71, %s72
    %p84 = scmp.eq.s32.totalorder %s15, 3
    %p85 = por %p83, %p84
    %p87 = scmp.ne.s32.totalorder %s72, %s86
    %p88 = scmp.eq.s32.totalorder %s15, 0
    %p89 = por %p87, %p88
    %s90 = ssub.s32 %s9, %s16
    %p91 = scmp.eq.s32.totalorder %s90, 0
    %s93 = sadd.s32 %s92, 1
    %s94 = scalar_select %p91, %s92, %s93
    %p97 = pneg %p91
    %p98 = scmp.eq.s32.totalorder %s9, 3
    %p99 = por %p97, %p98
    %p100 = scmp.ne.s32.totalorder %s92, %s95
    %p101 = scmp.eq.s32.totalorder %s9, 0
    %p102 = por %p100, %p101
    %p103 = scmp.ne.s32.totalorder %s92, %s95
    %p104 = scmp.eq.s32.totalorder %s14, 3
    %p105 = por %p103, %p104
    %p106 = scmp.ne.s32.totalorder %s95, %s96
    %p107 = scmp.eq.s32.totalorder %s14, 0
    %p108 = por %p106, %p107
    %p109 = scmp.ne.s32.totalorder %s95, %s96
    %p110 = scmp.eq.s32.totalorder %s15, 3
    %p111 = por %p109, %p110
    %p113 = scmp.ne.s32.totalorder %s96, %s112
    %p114 = scmp.eq.s32.totalorder %s15, 0
    %p115 = por %p113, %p114
    %p116 = scmp.le.s32.totalorder 1, %s9
    %p117 = scmp.lt.s32.totalorder %s9, 5
    %p118 = pnand %p116, %p117
    %p119 = pneg %p118
    // Predicated region
    $region9: #{tpu_custom_call.1} parent=5 // pred_check
      _
    $region10: #{tpu_custom_call.1} parent=5 // pred_check_branch
      %121 = sbr.rel (%p118) target = $region12
    $region11: #{tpu_custom_call.1} parent=5 // pred_region
      %s122 = ssub.s32 %s9, 1
      // Predicated region
      $region13: #{tpu_custom_call.1} parent=11 // pred_check
        %p123 = pneg %p82
      $region14: #{tpu_custom_call.1} parent=11 // pred_check_branch
        %125 = sbr.rel (%p123) target = $region16
      $region15: #{tpu_custom_call.1} parent=11 // pred_region
        _
      $region16: #{tpu_custom_call.1} parent=11 // pred_fallthru
        _
    $region12: #{tpu_custom_call.1} parent=5 // pred_fallthru
      _
    %p126 = scmp.lt.s32.totalorder %s9, 4
    // Predicated region
    $region17: #{tpu_custom_call.1} parent=5 // pred_check
      %p127 = pneg %p126
    $region18: #{tpu_custom_call.1} parent=5 // pred_check_branch
      %129 = sbr.rel (%p127) target = $region20
    $region19: #{tpu_custom_call.1} parent=5 // pred_region
      // Predicated region
      $region21: #{tpu_custom_call.1} parent=19 // pred_check
        %p130 = pneg %p29
      $region22: #{tpu_custom_call.1} parent=19 // pred_check_branch
        %132 = sbr.rel (%p130) target = $region24
      $region23: #{tpu_custom_call.1} parent=19 // pred_region
        %s133 = smul.u32 4, %s9
        %p134 = scmp.lt.s32.totalorder %s133, 15
        %s135 = scalar_select %p134, %s133, 15
        %s136 = smul.addr %s135, 8
        %s137 = scalar_lea.vmem %s0, %s136
        %s138 = smul.u32 4, %s9
      $region24: #{tpu_custom_call.1} parent=19 // pred_fallthru
        _
      // Predicated region
      $region25: #{tpu_custom_call.1} parent=19 // pred_check
        %p139 = pneg %p55
      $region26: #{tpu_custom_call.1} parent=19 // pred_check_branch
        %141 = sbr.rel (%p139) target = $region28
      $region27: #{tpu_custom_call.1} parent=19 // pred_region
        %s142 = smul.u32 4, %s9
        %p143 = scmp.lt.s32.totalorder %s142, 15
        %s144 = scalar_select %p143, %s142, 15
        %s145 = smul.addr %s144, 8
        %s146 = scalar_lea.vmem %s1, %s145
        %s147 = smul.u32 4, %s9
      $region28: #{tpu_custom_call.1} parent=19 // pred_fallthru
        _
    $region20: #{tpu_custom_call.1} parent=5 // pred_fallthru
      _
    %p148 = scmp.le.s32.totalorder 1, %s9
    %p149 = scmp.lt.s32.totalorder %s9, 5
    %p150 = pnand %p148, %p149
    %p151 = pneg %p150
    // Predicated region
    $region29: #{tpu_custom_call.1} parent=5 // pred_check
      _
    $region30: #{tpu_custom_call.1} parent=5 // pred_check_branch
      %153 = sbr.rel (%p150) target = $region32
    $region31: #{tpu_custom_call.1} parent=5 // pred_region
      %s154 = ssub.s32 %s9, 1
      %s155 = smul.u32 4, %s14
      %p156 = scmp.lt.s32.totalorder %s155, 15
      %s157 = scalar_select %p156, %s155, 15
      %s158 = smul.addr %s157, 8
      %s159 = scalar_lea.vmem %s0, %s158
      %p160 = pneg %p35
      %p161 = pneg %p32
      %s162 = smul.u32 4, %s14
      %p163 = scmp.lt.s32.totalorder %s162, 15
      %s164 = scalar_select %p163, %s162, 15
      %s165 = smul.addr %s164, 8
      %s166 = scalar_lea.vmem %s1, %s165
      %p167 = pneg %p61
      %p168 = pneg %p58
      %p169 = pneg %p82
      %p170 = pneg %p79
      %p171 = pneg %p108
      %p172 = pneg %p105
      %s173 = smul.u32 4, %s14
      %p174 = scmp.lt.s32.totalorder %s173, 15
      %s175 = scalar_select %p174, %s173, 15
      %s176 = smul.addr %s175, 8
      %s177 = scalar_lea.vmem %s3, %s176
      %s178 = smul.u32 4, %s14
      %p179 = scmp.lt.s32.totalorder %s178, 15
      %s180 = scalar_select %p179, %s178, 15
      %s181 = smul.addr %s180, 8
      %s182 = scalar_lea.vmem %s0, %s181
      %s183 = smul.u32 4, %s14
      %s184 = smul.u32 4, %s14
      %p185 = scmp.lt.s32.totalorder %s184, 15
      %s186 = scalar_select %p185, %s184, 15
      %s187 = smul.addr %s186, 8
      %s188 = scalar_lea.vmem %s1, %s187
      %s189 = smul.u32 4, %s14
      %s190 = smul.u32 4, %s14
      %p191 = scmp.lt.s32.totalorder %s190, 15
      %s192 = scalar_select %p191, %s190, 15
      %s193 = smul.addr %s192, 8
      %s194 = scalar_lea.vmem %s3, %s193
      %s195 = smul.u32 4, %s14
      %v196 = vld [vmem:[%s182] sm:$0xff]
      %v197 = vld [vmem:[%s182 + $0x8] sm:$0xff]
      %v198 = vld [vmem:[%s182 + $0x10] sm:$0xff]
      %v199 = vld [vmem:[%s182 + $0x18] sm:$0xff]
      %v200 = vld [vmem:[%s2] sm:$0xff]
      %v201 = vld [vmem:[%s2 + $0x8] sm:$0xff]
      %v202 = vld [vmem:[%s2 + $0x10] sm:$0xff]
      %v203 = vld [vmem:[%s2 + $0x18] sm:$0xff]
      %v204 = vld [vmem:[%s2 + $0x20] sm:$0xff]
      %v205 = vld [vmem:[%s2 + $0x28] sm:$0xff]
      %v206 = vld [vmem:[%s2 + $0x30] sm:$0xff]
      %v207 = vld [vmem:[%s2 + $0x38] sm:$0xff]
      %v208 = vld [vmem:[%s2 + $0x40] sm:$0xff]
      %v209 = vld [vmem:[%s2 + $0x48] sm:$0xff]
      %v210 = vld [vmem:[%s2 + $0x50] sm:$0xff]
      %v211 = vld [vmem:[%s2 + $0x58] sm:$0xff]
      %v212 = vld [vmem:[%s2 + $0x60] sm:$0xff]
      %v213 = vld [vmem:[%s2 + $0x68] sm:$0xff]
      %v214 = vld [vmem:[%s2 + $0x70] sm:$0xff]
      %v215 = vld [vmem:[%s2 + $0x78] sm:$0xff]
      %216 = vmatprep.subr.mxu0 0.0
      %v217 = vand.u32 %v215, 4294901760
      %218 = vmatpush1.msra.mxu0 %v217
      %219 = vmatprep.subr.mxu0 0.0
      %v220 = vand.u32 %v214, 4294901760
      %221 = vmatpush1.msra.mxu0 %v220
      %222 = vmatprep.subr.mxu0 0.0
      %v223 = vand.u32 %v213, 4294901760
      %224 = vmatpush1.msra.mxu0 %v223
      %225 = vmatprep.subr.mxu0 0.0
      %v226 = vand.u32 %v212, 4294901760
      %227 = vmatpush1.msra.mxu0 %v226
      %228 = vmatprep.subr.mxu0 0.0
      %v229 = vand.u32 %v211, 4294901760
      %230 = vmatpush1.msra.mxu0 %v229
      %231 = vmatprep.subr.mxu0 0.0
      %v232 = vand.u32 %v210, 4294901760
      %233 = vmatpush1.msra.mxu0 %v232
      %234 = vmatprep.subr.mxu0 0.0
      %v235 = vand.u32 %v209, 4294901760
      %236 = vmatpush1.msra.mxu0 %v235
      %237 = vmatprep.subr.mxu0 0.0
      %v238 = vand.u32 %v208, 4294901760
      %239 = vmatpush1.msra.mxu0 %v238
      %240 = vmatprep.subr.mxu0 0.0
      %v241 = vand.u32 %v207, 4294901760
      %242 = vmatpush1.msra.mxu0 %v241
      %243 = vmatprep.subr.mxu0 0.0
      %v244 = vand.u32 %v206, 4294901760
      %245 = vmatpush1.msra.mxu0 %v244
      %246 = vmatprep.subr.mxu0 0.0
      %v247 = vand.u32 %v205, 4294901760
      %248 = vmatpush1.msra.mxu0 %v247
      %249 = vmatprep.subr.mxu0 0.0
      %v250 = vand.u32 %v204, 4294901760
      %251 = vmatpush1.msra.mxu0 %v250
      %252 = vmatprep.subr.mxu0 0.0
      %v253 = vand.u32 %v203, 4294901760
      %254 = vmatpush1.msra.mxu0 %v253
      %255 = vmatprep.subr.mxu0 0.0
      %v256 = vand.u32 %v202, 4294901760
      %257 = vmatpush1.msra.mxu0 %v256
      %258 = vmatprep.subr.mxu0 0.0
      %v259 = vand.u32 %v201, 4294901760
      %260 = vmatpush1.msra.mxu0 %v259
      %261 = vmatprep.subr.mxu0 0.0
      %v262 = vand.u32 %v200, 4294901760
      %263 = vmatpush1.msra.mxu0 %v262
      %264 = vmatprep.subr.mxu0 0.0
      %265 = vmatpush2.msra.mxu0 0.0
      %266 = vmatprep.subr.mxu0 0.0
      %267 = vmatpush2.msra.mxu0 0.0
      %268 = vmatprep.subr.mxu0 0.0
      %269 = vmatpush2.msra.mxu0 0.0
      %270 = vmatprep.subr.mxu0 0.0
      %271 = vmatpush2.msra.mxu0 0.0
      %272 = vmatprep.subr.mxu0 0.0
      %273 = vmatpush2.msra.mxu0 0.0
      %274 = vmatprep.subr.mxu0 0.0
      %275 = vmatpush2.msra.mxu0 0.0
      %276 = vmatprep.subr.mxu0 0.0
      %277 = vmatpush2.msra.mxu0 0.0
      %278 = vmatprep.subr.mxu0 0.0
      %279 = vmatpush2.msra.mxu0 0.0
      %280 = vmatprep.subr.mxu0 0.0
      %281 = vmatpush2.msra.mxu0 0.0
      %282 = vmatprep.subr.mxu0 0.0
      %283 = vmatpush2.msra.mxu0 0.0
      %284 = vmatprep.subr.mxu0 0.0
      %285 = vmatpush2.msra.mxu0 0.0
      %286 = vmatprep.subr.mxu0 0.0
      %287 = vmatpush2.msra.mxu0 0.0
      %288 = vmatprep.subr.mxu0 0.0
      %289 = vmatpush2.msra.mxu0 0.0
      %290 = vmatprep.subr.mxu0 0.0
      %291 = vmatpush2.msra.mxu0 0.0
      %292 = vmatprep.subr.mxu0 0.0
      %293 = vmatpush2.msra.mxu0 0.0
      %294 = vmatprep.subr.mxu0 0.0
      %295 = vmatpush2.msra.mxu0 0.0
      %296 = vmatprep.mubr.f32.mxu0 0.0
      %v297 = vand.u32 %v196, 4294901760
      %v298 = vsub.f32 %v196, %v297
      %v299 = vand.u32 %v298, 4294901760
      %v300 = vsub.f32 %v298, %v299
      %v301 = vand.u32 %v300, 4294901760
      %302 = vmatmul.mubr.f32.gmra.mxu0 %v301
      %v303 = vpop.f32.mrf.mxu0
      %v304 = vadd.f32 0.0, %v303
      %v305 = vpop.f32.mrf.mxu0
      %306 = vmatprep.mubr.f32.mxu0 0.0
      %v307 = vand.u32 %v197, 4294901760
      %v308 = vsub.f32 %v197, %v307
      %v309 = vand.u32 %v308, 4294901760
      %v310 = vsub.f32 %v308, %v309
      %v311 = vand.u32 %v310, 4294901760
      %312 = vmatmul.mubr.f32.gmra.mxu0 %v311
      %v313 = vpop.f32.mrf.mxu0
      %v314 = vadd.f32 0.0, %v313
      %v315 = vpop.f32.mrf.mxu0
      %316 = vmatprep.mubr.f32.mxu0 0.0
      %v317 = vand.u32 %v198, 4294901760
      %v318 = vsub.f32 %v198, %v317
      %v319 = vand.u32 %v318, 4294901760
      %v320 = vsub.f32 %v318, %v319
      %v321 = vand.u32 %v320, 4294901760
      %322 = vmatmul.mubr.f32.gmra.mxu0 %v321
      %v323 = vpop.f32.mrf.mxu0
      %v324 = vadd.f32 0.0, %v323
      %v325 = vpop.f32.mrf.mxu0
      %326 = vmatprep.mubr.f32.mxu0 0.0
      %v327 = vand.u32 %v199, 4294901760
      %v328 = vsub.f32 %v199, %v327
      %v329 = vand.u32 %v328, 4294901760
      %v330 = vsub.f32 %v328, %v329
      %v331 = vand.u32 %v330, 4294901760
      %332 = vmatmul.mubr.f32.gmra.mxu0 %v331
      %v333 = vpop.f32.mrf.mxu0
      %v334 = vadd.f32 0.0, %v333
      %v335 = vpop.f32.mrf.mxu0
      %336 = vdwg.mxu0
      %337 = vmatprep.subr.mxu0 0.0
      %v338 = vand.u32 %v215, 4294901760
      %v339 = vsub.f32 %v215, %v338
      %v340 = vand.u32 %v339, 4294901760
      %v341 = vsub.f32 %v339, %v340
      %v342 = vand.u32 %v341, 4294901760
      %343 = vmatpush1.msra.mxu0 %v342
      %344 = vmatprep.subr.mxu0 0.0
      %v345 = vand.u32 %v214, 4294901760
      %v346 = vsub.f32 %v214, %v345
      %v347 = vand.u32 %v346, 4294901760
      %v348 = vsub.f32 %v346, %v347
      %v349 = vand.u32 %v348, 4294901760
      %350 = vmatpush1.msra.mxu0 %v349
      %351 = vmatprep.subr.mxu0 0.0
      %v352 = vand.u32 %v213, 4294901760
      %v353 = vsub.f32 %v213, %v352
      %v354 = vand.u32 %v353, 4294901760
      %v355 = vsub.f32 %v353, %v354
      %v356 = vand.u32 %v355, 4294901760
      %357 = vmatpush1.msra.mxu0 %v356
      %358 = vmatprep.subr.mxu0 0.0
      %v359 = vand.u32 %v212, 4294901760
      %v360 = vsub.f32 %v212, %v359
      %v361 = vand.u32 %v360, 4294901760
      %v362 = vsub.f32 %v360, %v361
      %v363 = vand.u32 %v362, 4294901760
      %364 = vmatpush1.msra.mxu0 %v363
      %365 = vmatprep.subr.mxu0 0.0
      %v366 = vand.u32 %v211, 4294901760
      %v367 = vsub.f32 %v211, %v366
      %v368 = vand.u32 %v367, 4294901760
      %v369 = vsub.f32 %v367, %v368
      %v370 = vand.u32 %v369, 4294901760
      %371 = vmatpush1.msra.mxu0 %v370
      %372 = vmatprep.subr.mxu0 0.0
      %v373 = vand.u32 %v210, 4294901760
      %v374 = vsub.f32 %v210, %v373
      %v375 = vand.u32 %v374, 4294901760
      %v376 = vsub.f32 %v374, %v375
      %v377 = vand.u32 %v376, 4294901760
      %378 = vmatpush1.msra.mxu0 %v377
      %379 = vmatprep.subr.mxu0 0.0
      %v380 = vand.u32 %v209, 4294901760
      %v381 = vsub.f32 %v209, %v380
      %v382 = vand.u32 %v381, 4294901760
      %v383 = vsub.f32 %v381, %v382
      %v384 = vand.u32 %v383, 4294901760
      %385 = vmatpush1.msra.mxu0 %v384
      %386 = vmatprep.subr.mxu0 0.0
      %v387 = vand.u32 %v208, 4294901760
      %v388 = vsub.f32 %v208, %v387
      %v389 = vand.u32 %v388, 4294901760
      %v390 = vsub.f32 %v388, %v389
      %v391 = vand.u32 %v390, 4294901760
      %392 = vmatpush1.msra.mxu0 %v391
      %393 = vmatprep.subr.mxu0 0.0
      %v394 = vand.u32 %v207, 4294901760
      %v395 = vsub.f32 %v207, %v394
      %v396 = vand.u32 %v395, 4294901760
      %v397 = vsub.f32 %v395, %v396
      %v398 = vand.u32 %v397, 4294901760
      %399 = vmatpush1.msra.mxu0 %v398
      %400 = vmatprep.subr.mxu0 0.0
      %v401 = vand.u32 %v206, 4294901760
      %v402 = vsub.f32 %v206, %v401
      %v403 = vand.u32 %v402, 4294901760
      %v404 = vsub.f32 %v402, %v403
      %v405 = vand.u32 %v404, 4294901760
      %406 = vmatpush1.msra.mxu0 %v405
      %407 = vmatprep.subr.mxu0 0.0
      %v408 = vand.u32 %v205, 4294901760
      %v409 = vsub.f32 %v205, %v408
      %v410 = vand.u32 %v409, 4294901760
      %v411 = vsub.f32 %v409, %v410
      %v412 = vand.u32 %v411, 4294901760
      %413 = vmatpush1.msra.mxu0 %v412
      %414 = vmatprep.subr.mxu0 0.0
      %v415 = vand.u32 %v204, 4294901760
      %v416 = vsub.f32 %v204, %v415
      %v417 = vand.u32 %v416, 4294901760
      %v418 = vsub.f32 %v416, %v417
      %v419 = vand.u32 %v418, 4294901760
      %420 = vmatpush1.msra.mxu0 %v419
      %421 = vmatprep.subr.mxu0 0.0
      %v422 = vand.u32 %v203, 4294901760
      %v423 = vsub.f32 %v203, %v422
      %v424 = vand.u32 %v423, 4294901760
      %v425 = vsub.f32 %v423, %v424
      %v426 = vand.u32 %v425, 4294901760
      %427 = vmatpush1.msra.mxu0 %v426
      %428 = vmatprep.subr.mxu0 0.0
      %v429 = vand.u32 %v202, 4294901760
      %v430 = vsub.f32 %v202, %v429
      %v431 = vand.u32 %v430, 4294901760
      %v432 = vsub.f32 %v430, %v431
      %v433 = vand.u32 %v432, 4294901760
      %434 = vmatpush1.msra.mxu0 %v433
      %435 = vmatprep.subr.mxu0 0.0
      %v436 = vand.u32 %v201, 4294901760
      %v437 = vsub.f32 %v201, %v436
      %v438 = vand.u32 %v437, 4294901760
      %v439 = vsub.f32 %v437, %v438
      %v440 = vand.u32 %v439, 4294901760
      %441 = vmatpush1.msra.mxu0 %v440
      %442 = vmatprep.subr.mxu0 0.0
      %v443 = vand.u32 %v200, 4294901760
      %v444 = vsub.f32 %v200, %v443
      %v445 = vand.u32 %v444, 4294901760
      %v446 = vsub.f32 %v444, %v445
      %v447 = vand.u32 %v446, 4294901760
      %448 = vmatpush1.msra.mxu0 %v447
      %449 = vmatprep.subr.mxu0 0.0
      %450 = vmatpush2.msra.mxu0 0.0
      %451 = vmatprep.subr.mxu0 0.0
      %452 = vmatpush2.msra.mxu0 0.0
      %453 = vmatprep.subr.mxu0 0.0
      %454 = vmatpush2.msra.mxu0 0.0
      %455 = vmatprep.subr.mxu0 0.0
      %456 = vmatpush2.msra.mxu0 0.0
      %457 = vmatprep.subr.mxu0 0.0
      %458 = vmatpush2.msra.mxu0 0.0
      %459 = vmatprep.subr.mxu0 0.0
      %460 = vmatpush2.msra.mxu0 0.0
      %461 = vmatprep.subr.mxu0 0.0
      %462 = vmatpush2.msra.mxu0 0.0
      %463 = vmatprep.subr.mxu0 0.0
      %464 = vmatpush2.msra.mxu0 0.0
      %465 = vmatprep.subr.mxu0 0.0
      %466 = vmatpush2.msra.mxu0 0.0
      %467 = vmatprep.subr.mxu0 0.0
      %468 = vmatpush2.msra.mxu0 0.0
      %469 = vmatprep.subr.mxu0 0.0
      %470 = vmatpush2.msra.mxu0 0.0
      %471 = vmatprep.subr.mxu0 0.0
      %472 = vmatpush2.msra.mxu0 0.0
      %473 = vmatprep.subr.mxu0 0.0
      %474 = vmatpush2.msra.mxu0 0.0
      %475 = vmatprep.subr.mxu0 0.0
      %476 = vmatpush2.msra.mxu0 0.0
      %477 = vmatprep.subr.mxu0 0.0
      %478 = vmatpush2.msra.mxu0 0.0
      %479 = vmatprep.subr.mxu0 0.0
      %480 = vmatpush2.msra.mxu0 0.0
      %481 = vmatprep.mubr.f32.mxu0 0.0
      %v482 = vand.u32 %v196, 4294901760
      %483 = vmatmul.mubr.f32.gmra.mxu0 %v482
      %v484 = vpop.f32.mrf.mxu0
      %v485 = vadd.f32 %v304, %v484
      %v486 = vpop.f32.mrf.mxu0
      %487 = vmatprep.mubr.f32.mxu0 0.0
      %v488 = vand.u32 %v197, 4294901760
      %489 = vmatmul.mubr.f32.gmra.mxu0 %v488
      %v490 = vpop.f32.mrf.mxu0
      %v491 = vadd.f32 %v314, %v490
      %v492 = vpop.f32.mrf.mxu0
      %493 = vmatprep.mubr.f32.mxu0 0.0
      %v494 = vand.u32 %v198, 4294901760
      %495 = vmatmul.mubr.f32.gmra.mxu0 %v494
      %v496 = vpop.f32.mrf.mxu0
      %v497 = vadd.f32 %v324, %v496
      %v498 = vpop.f32.mrf.mxu0
      %499 = vmatprep.mubr.f32.mxu0 0.0
      %v500 = vand.u32 %v199, 4294901760
      %501 = vmatmul.mubr.f32.gmra.mxu0 %v500
      %v502 = vpop.f32.mrf.mxu0
      %v503 = vadd.f32 %v334, %v502
      %v504 = vpop.f32.mrf.mxu0
      %505 = vdwg.mxu0
      %506 = vmatprep.subr.mxu0 0.0
      %v507 = vand.u32 %v215, 4294901760
      %v508 = vsub.f32 %v215, %v507
      %509 = vmatpush1.msra.mxu0 %v508
      %510 = vmatprep.subr.mxu0 0.0
      %v511 = vand.u32 %v214, 4294901760
      %v512 = vsub.f32 %v214, %v511
      %513 = vmatpush1.msra.mxu0 %v512
      %514 = vmatprep.subr.mxu0 0.0
      %v515 = vand.u32 %v213, 4294901760
      %v516 = vsub.f32 %v213, %v515
      %517 = vmatpush1.msra.mxu0 %v516
      %518 = vmatprep.subr.mxu0 0.0
      %v519 = vand.u32 %v212, 4294901760
      %v520 = vsub.f32 %v212, %v519
      %521 = vmatpush1.msra.mxu0 %v520
      %522 = vmatprep.subr.mxu0 0.0
      %v523 = vand.u32 %v211, 4294901760
      %v524 = vsub.f32 %v211, %v523
      %525 = vmatpush1.msra.mxu0 %v524
      %526 = vmatprep.subr.mxu0 0.0
      %v527 = vand.u32 %v210, 4294901760
      %v528 = vsub.f32 %v210, %v527
      %529 = vmatpush1.msra.mxu0 %v528
      %530 = vmatprep.subr.mxu0 0.0
      %v531 = vand.u32 %v209, 4294901760
      %v532 = vsub.f32 %v209, %v531
      %533 = vmatpush1.msra.mxu0 %v532
      %534 = vmatprep.subr.mxu0 0.0
      %v535 = vand.u32 %v208, 4294901760
      %v536 = vsub.f32 %v208, %v535
      %537 = vmatpush1.msra.mxu0 %v536
      %538 = vmatprep.subr.mxu0 0.0
      %v539 = vand.u32 %v207, 4294901760
      %v540 = vsub.f32 %v207, %v539
      %541 = vmatpush1.msra.mxu0 %v540
      %542 = vmatprep.subr.mxu0 0.0
      %v543 = vand.u32 %v206, 4294901760
      %v544 = vsub.f32 %v206, %v543
      %545 = vmatpush1.msra.mxu0 %v544
      %546 = vmatprep.subr.mxu0 0.0
      %v547 = vand.u32 %v205, 4294901760
      %v548 = vsub.f32 %v205, %v547
      %549 = vmatpush1.msra.mxu0 %v548
      %550 = vmatprep.subr.mxu0 0.0
      %v551 = vand.u32 %v204, 4294901760
      %v552 = vsub.f32 %v204, %v551
      %553 = vmatpush1.msra.mxu0 %v552
      %554 = vmatprep.subr.mxu0 0.0
      %v555 = vand.u32 %v203, 4294901760
      %v556 = vsub.f32 %v203, %v555
      %557 = vmatpush1.msra.mxu0 %v556
      %558 = vmatprep.subr.mxu0 0.0
      %v559 = vand.u32 %v202, 4294901760
      %v560 = vsub.f32 %v202, %v559
      %561 = vmatpush1.msra.mxu0 %v560
      %562 = vmatprep.subr.mxu0 0.0
      %v563 = vand.u32 %v201, 4294901760
      %v564 = vsub.f32 %v201, %v563
      %565 = vmatpush1.msra.mxu0 %v564
      %566 = vmatprep.subr.mxu0 0.0
      %v567 = vand.u32 %v200, 4294901760
      %v568 = vsub.f32 %v200, %v567
      %569 = vmatpush1.msra.mxu0 %v568
      %570 = vmatprep.subr.mxu0 0.0
      %571 = vmatpush2.msra.mxu0 0.0
      %572 = vmatprep.subr.mxu0 0.0
      %573 = vmatpush2.msra.mxu0 0.0
      %574 = vmatprep.subr.mxu0 0.0
      %575 = vmatpush2.msra.mxu0 0.0
      %576 = vmatprep.subr.mxu0 0.0
      %577 = vmatpush2.msra.mxu0 0.0
      %578 = vmatprep.subr.mxu0 0.0
      %579 = vmatpush2.msra.mxu0 0.0
      %580 = vmatprep.subr.mxu0 0.0
      %581 = vmatpush2.msra.mxu0 0.0
      %582 = vmatprep.subr.mxu0 0.0
      %583 = vmatpush2.msra.mxu0 0.0
      %584 = vmatprep.subr.mxu0 0.0
      %585 = vmatpush2.msra.mxu0 0.0
      %586 = vmatprep.subr.mxu0 0.0
      %587 = vmatpush2.msra.mxu0 0.0
      %588 = vmatprep.subr.mxu0 0.0
      %589 = vmatpush2.msra.mxu0 0.0
      %590 = vmatprep.subr.mxu0 0.0
      %591 = vmatpush2.msra.mxu0 0.0
      %592 = vmatprep.subr.mxu0 0.0
      %593 = vmatpush2.msra.mxu0 0.0
      %594 = vmatprep.subr.mxu0 0.0
      %595 = vmatpush2.msra.mxu0 0.0
      %596 = vmatprep.subr.mxu0 0.0
      %597 = vmatpush2.msra.mxu0 0.0
      %598 = vmatprep.subr.mxu0 0.0
      %599 = vmatpush2.msra.mxu0 0.0
      %600 = vmatprep.subr.mxu0 0.0
      %601 = vmatpush2.msra.mxu0 0.0
      %602 = vmatprep.mubr.f32.mxu0 0.0
      %v603 = vand.u32 %v196, 4294901760
      %v604 = vsub.f32 %v196, %v603
      %605 = vmatmul.mubr.f32.gmra.mxu0 %v604
      %v606 = vpop.f32.mrf.mxu0
      %v607 = vadd.f32 %v485, %v606
      %v608 = vpop.f32.mrf.mxu0
      %609 = vmatprep.mubr.f32.mxu0 0.0
      %v610 = vand.u32 %v197, 4294901760
      %v611 = vsub.f32 %v197, %v610
      %612 = vmatmul.mubr.f32.gmra.mxu0 %v611
      %v613 = vpop.f32.mrf.mxu0
      %v614 = vadd.f32 %v491, %v613
      %v615 = vpop.f32.mrf.mxu0
      %616 = vmatprep.mubr.f32.mxu0 0.0
      %v617 = vand.u32 %v198, 4294901760
      %v618 = vsub.f32 %v198, %v617
      %619 = vmatmul.mubr.f32.gmra.mxu0 %v618
      %v620 = vpop.f32.mrf.mxu0
      %v621 = vadd.f32 %v497, %v620
      %v622 = vpop.f32.mrf.mxu0
      %623 = vmatprep.mubr.f32.mxu0 0.0
      %v624 = vand.u32 %v199, 4294901760
      %v625 = vsub.f32 %v199, %v624
      %626 = vmatmul.mubr.f32.gmra.mxu0 %v625
      %v627 = vpop.f32.mrf.mxu0
      %v628 = vadd.f32 %v503, %v627
      %v629 = vpop.f32.mrf.mxu0
      %630 = vdwg.mxu0
      %631 = vmatprep.subr.mxu0 0.0
      %v632 = vand.u32 %v215, 4294901760
      %633 = vmatpush1.msra.mxu0 %v632
      %634 = vmatprep.subr.mxu0 0.0
      %v635 = vand.u32 %v214, 4294901760
      %636 = vmatpush1.msra.mxu0 %v635
      %637 = vmatprep.subr.mxu0 0.0
      %v638 = vand.u32 %v213, 4294901760
      %639 = vmatpush1.msra.mxu0 %v638
      %640 = vmatprep.subr.mxu0 0.0
      %v641 = vand.u32 %v212, 4294901760
      %642 = vmatpush1.msra.mxu0 %v641
      %643 = vmatprep.subr.mxu0 0.0
      %v644 = vand.u32 %v211, 4294901760
      %645 = vmatpush1.msra.mxu0 %v644
      %646 = vmatprep.subr.mxu0 0.0
      %v647 = vand.u32 %v210, 4294901760
      %648 = vmatpush1.msra.mxu0 %v647
      %649 = vmatprep.subr.mxu0 0.0
      %v650 = vand.u32 %v209, 4294901760
      %651 = vmatpush1.msra.mxu0 %v650
      %652 = vmatprep.subr.mxu0 0.0
      %v653 = vand.u32 %v208, 4294901760
      %654 = vmatpush1.msra.mxu0 %v653
      %655 = vmatprep.subr.mxu0 0.0
      %v656 = vand.u32 %v207, 4294901760
      %657 = vmatpush1.msra.mxu0 %v656
      %658 = vmatprep.subr.mxu0 0.0
      %v659 = vand.u32 %v206, 4294901760
      %660 = vmatpush1.msra.mxu0 %v659
      %661 = vmatprep.subr.mxu0 0.0
      %v662 = vand.u32 %v205, 4294901760
      %663 = vmatpush1.msra.mxu0 %v662
      %664 = vmatprep.subr.mxu0 0.0
      %v665 = vand.u32 %v204, 4294901760
      %666 = vmatpush1.msra.mxu0 %v665
      %667 = vmatprep.subr.mxu0 0.0
      %v668 = vand.u32 %v203, 4294901760
      %669 = vmatpush1.msra.mxu0 %v668
      %670 = vmatprep.subr.mxu0 0.0
      %v671 = vand.u32 %v202, 4294901760
      %672 = vmatpush1.msra.mxu0 %v671
      %673 = vmatprep.subr.mxu0 0.0
      %v674 = vand.u32 %v201, 4294901760
      %675 = vmatpush1.msra.mxu0 %v674
      %676 = vmatprep.subr.mxu0 0.0
      %v677 = vand.u32 %v200, 4294901760
      %678 = vmatpush1.msra.mxu0 %v677
      %679 = vmatprep.subr.mxu0 0.0
      %680 = vmatpush2.msra.mxu0 0.0
      %681 = vmatprep.subr.mxu0 0.0
      %682 = vmatpush2.msra.mxu0 0.0
      %683 = vmatprep.subr.mxu0 0.0
      %684 = vmatpush2.msra.mxu0 0.0
      %685 = vmatprep.subr.mxu0 0.0
      %686 = vmatpush2.msra.mxu0 0.0
      %687 = vmatprep.subr.mxu0 0.0
      %688 = vmatpush2.msra.mxu0 0.0
      %689 = vmatprep.subr.mxu0 0.0
      %690 = vmatpush2.msra.mxu0 0.0
      %691 = vmatprep.subr.mxu0 0.0
      %692 = vmatpush2.msra.mxu0 0.0
      %693 = vmatprep.subr.mxu0 0.0
      %694 = vmatpush2.msra.mxu0 0.0
      %695 = vmatprep.subr.mxu0 0.0
      %696 = vmatpush2.msra.mxu0 0.0
      %697 = vmatprep.subr.mxu0 0.0
      %698 = vmatpush2.msra.mxu0 0.0
      %699 = vmatprep.subr.mxu0 0.0
      %700 = vmatpush2.msra.mxu0 0.0
      %701 = vmatprep.subr.mxu0 0.0
      %702 = vmatpush2.msra.mxu0 0.0
      %703 = vmatprep.subr.mxu0 0.0
      %704 = vmatpush2.msra.mxu0 0.0
      %705 = vmatprep.subr.mxu0 0.0
      %706 = vmatpush2.msra.mxu0 0.0
      %707 = vmatprep.subr.mxu0 0.0
      %708 = vmatpush2.msra.mxu0 0.0
      %709 = vmatprep.subr.mxu0 0.0
      %710 = vmatpush2.msra.mxu0 0.0
      %711 = vmatprep.mubr.f32.mxu0 0.0
      %v712 = vand.u32 %v196, 4294901760
      %v713 = vsub.f32 %v196, %v712
      %v714 = vand.u32 %v713, 4294901760
      %715 = vmatmul.mubr.f32.gmra.mxu0 %v714
      %v716 = vpop.f32.mrf.mxu0
      %v717 = vadd.f32 %v607, %v716
      %v718 = vpop.f32.mrf.mxu0
      %719 = vmatprep.mubr.f32.mxu0 0.0
      %v720 = vand.u32 %v197, 4294901760
      %v721 = vsub.f32 %v197, %v720
      %v722 = vand.u32 %v721, 4294901760
      %723 = vmatmul.mubr.f32.gmra.mxu0 %v722
      %v724 = vpop.f32.mrf.mxu0
      %v725 = vadd.f32 %v614, %v724
      %v726 = vpop.f32.mrf.mxu0
      %727 = vmatprep.mubr.f32.mxu0 0.0
      %v728 = vand.u32 %v198, 4294901760
      %v729 = vsub.f32 %v198, %v728
      %v730 = vand.u32 %v729, 4294901760
      %731 = vmatmul.mubr.f32.gmra.mxu0 %v730
      %v732 = vpop.f32.mrf.mxu0
      %v733 = vadd.f32 %v621, %v732
      %v734 = vpop.f32.mrf.mxu0
      %735 = vmatprep.mubr.f32.mxu0 0.0
      %v736 = vand.u32 %v199, 4294901760
      %v737 = vsub.f32 %v199, %v736
      %v738 = vand.u32 %v737, 4294901760
      %739 = vmatmul.mubr.f32.gmra.mxu0 %v738
      %v740 = vpop.f32.mrf.mxu0
      %v741 = vadd.f32 %v628, %v740
      %v742 = vpop.f32.mrf.mxu0
      %743 = vdwg.mxu0
      %744 = vmatprep.subr.mxu0 0.0
      %v745 = vand.u32 %v215, 4294901760
      %v746 = vsub.f32 %v215, %v745
      %v747 = vand.u32 %v746, 4294901760
      %748 = vmatpush1.msra.mxu0 %v747
      %749 = vmatprep.subr.mxu0 0.0
      %v750 = vand.u32 %v214, 4294901760
      %v751 = vsub.f32 %v214, %v750
      %v752 = vand.u32 %v751, 4294901760
      %753 = vmatpush1.msra.mxu0 %v752
      %754 = vmatprep.subr.mxu0 0.0
      %v755 = vand.u32 %v213, 4294901760
      %v756 = vsub.f32 %v213, %v755
      %v757 = vand.u32 %v756, 4294901760
      %758 = vmatpush1.msra.mxu0 %v757
      %759 = vmatprep.subr.mxu0 0.0
      %v760 = vand.u32 %v212, 4294901760
      %v761 = vsub.f32 %v212, %v760
      %v762 = vand.u32 %v761, 4294901760
      %763 = vmatpush1.msra.mxu0 %v762
      %764 = vmatprep.subr.mxu0 0.0
      %v765 = vand.u32 %v211, 4294901760
      %v766 = vsub.f32 %v211, %v765
      %v767 = vand.u32 %v766, 4294901760
      %768 = vmatpush1.msra.mxu0 %v767
      %769 = vmatprep.subr.mxu0 0.0
      %v770 = vand.u32 %v210, 4294901760
      %v771 = vsub.f32 %v210, %v770
      %v772 = vand.u32 %v771, 4294901760
      %773 = vmatpush1.msra.mxu0 %v772
      %774 = vmatprep.subr.mxu0 0.0
      %v775 = vand.u32 %v209, 4294901760
      %v776 = vsub.f32 %v209, %v775
      %v777 = vand.u32 %v776, 4294901760
      %778 = vmatpush1.msra.mxu0 %v777
      %779 = vmatprep.subr.mxu0 0.0
      %v780 = vand.u32 %v208, 4294901760
      %v781 = vsub.f32 %v208, %v780
      %v782 = vand.u32 %v781, 4294901760
      %783 = vmatpush1.msra.mxu0 %v782
      %784 = vmatprep.subr.mxu0 0.0
      %v785 = vand.u32 %v207, 4294901760
      %v786 = vsub.f32 %v207, %v785
      %v787 = vand.u32 %v786, 4294901760
      %788 = vmatpush1.msra.mxu0 %v787
      %789 = vmatprep.subr.mxu0 0.0
      %v790 = vand.u32 %v206, 4294901760
      %v791 = vsub.f32 %v206, %v790
      %v792 = vand.u32 %v791, 4294901760
      %793 = vmatpush1.msra.mxu0 %v792
      %794 = vmatprep.subr.mxu0 0.0
      %v795 = vand.u32 %v205, 4294901760
      %v796 = vsub.f32 %v205, %v795
      %v797 = vand.u32 %v796, 4294901760
      %798 = vmatpush1.msra.mxu0 %v797
      %799 = vmatprep.subr.mxu0 0.0
      %v800 = vand.u32 %v204, 4294901760
      %v801 = vsub.f32 %v204, %v800
      %v802 = vand.u32 %v801, 4294901760
      %803 = vmatpush1.msra.mxu0 %v802
      %804 = vmatprep.subr.mxu0 0.0
      %v805 = vand.u32 %v203, 4294901760
      %v806 = vsub.f32 %v203, %v805
      %v807 = vand.u32 %v806, 4294901760
      %808 = vmatpush1.msra.mxu0 %v807
      %809 = vmatprep.subr.mxu0 0.0
      %v810 = vand.u32 %v202, 4294901760
      %v811 = vsub.f32 %v202, %v810
      %v812 = vand.u32 %v811, 4294901760
      %813 = vmatpush1.msra.mxu0 %v812
      %814 = vmatprep.subr.mxu0 0.0
      %v815 = vand.u32 %v201, 4294901760
      %v816 = vsub.f32 %v201, %v815
      %v817 = vand.u32 %v816, 4294901760
      %818 = vmatpush1.msra.mxu0 %v817
      %819 = vmatprep.subr.mxu0 0.0
      %v820 = vand.u32 %v200, 4294901760
      %v821 = vsub.f32 %v200, %v820
      %v822 = vand.u32 %v821, 4294901760
      %823 = vmatpush1.msra.mxu0 %v822
      %824 = vmatprep.subr.mxu0 0.0
      %825 = vmatpush2.msra.mxu0 0.0
      %826 = vmatprep.subr.mxu0 0.0
      %827 = vmatpush2.msra.mxu0 0.0
      %828 = vmatprep.subr.mxu0 0.0
      %829 = vmatpush2.msra.mxu0 0.0
      %830 = vmatprep.subr.mxu0 0.0
      %831 = vmatpush2.msra.mxu0 0.0
      %832 = vmatprep.subr.mxu0 0.0
      %833 = vmatpush2.msra.mxu0 0.0
      %834 = vmatprep.subr.mxu0 0.0
      %835 = vmatpush2.msra.mxu0 0.0
      %836 = vmatprep.subr.mxu0 0.0
      %837 = vmatpush2.msra.mxu0 0.0
      %838 = vmatprep.subr.mxu0 0.0
      %839 = vmatpush2.msra.mxu0 0.0
      %840 = vmatprep.subr.mxu0 0.0
      %841 = vmatpush2.msra.mxu0 0.0
      %842 = vmatprep.subr.mxu0 0.0
      %843 = vmatpush2.msra.mxu0 0.0
      %844 = vmatprep.subr.mxu0 0.0
      %845 = vmatpush2.msra.mxu0 0.0
      %846 = vmatprep.subr.mxu0 0.0
      %847 = vmatpush2.msra.mxu0 0.0
      %848 = vmatprep.subr.mxu0 0.0
      %849 = vmatpush2.msra.mxu0 0.0
      %850 = vmatprep.subr.mxu0 0.0
      %851 = vmatpush2.msra.mxu0 0.0
      %852 = vmatprep.subr.mxu0 0.0
      %853 = vmatpush2.msra.mxu0 0.0
      %854 = vmatprep.subr.mxu0 0.0
      %855 = vmatpush2.msra.mxu0 0.0
      %856 = vmatprep.mubr.f32.mxu0 0.0
      %v857 = vand.u32 %v196, 4294901760
      %858 = vmatmul.mubr.f32.gmra.mxu0 %v857
      %v859 = vpop.f32.mrf.mxu0
      %v860 = vadd.f32 %v717, %v859
      %v861 = vpop.f32.mrf.mxu0
      %862 = vmatprep.mubr.f32.mxu0 0.0
      %v863 = vand.u32 %v197, 4294901760
      %864 = vmatmul.mubr.f32.gmra.mxu0 %v863
      %v865 = vpop.f32.mrf.mxu0
      %v866 = vadd.f32 %v725, %v865
      %v867 = vpop.f32.mrf.mxu0
      %868 = vmatprep.mubr.f32.mxu0 0.0
      %v869 = vand.u32 %v198, 4294901760
      %870 = vmatmul.mubr.f32.gmra.mxu0 %v869
      %v871 = vpop.f32.mrf.mxu0
      %v872 = vadd.f32 %v733, %v871
      %v873 = vpop.f32.mrf.mxu0
      %874 = vmatprep.mubr.f32.mxu0 0.0
      %v875 = vand.u32 %v199, 4294901760
      %876 = vmatmul.mubr.f32.gmra.mxu0 %v875
      %v877 = vpop.f32.mrf.mxu0
      %v878 = vadd.f32 %v741, %v877
      %v879 = vpop.f32.mrf.mxu0
      %880 = vdwg.mxu0
      %881 = vmatprep.subr.mxu0 0.0
      %v882 = vand.u32 %v215, 4294901760
      %883 = vmatpush1.msra.mxu0 %v882
      %884 = vmatprep.subr.mxu0 0.0
      %v885 = vand.u32 %v214, 4294901760
      %886 = vmatpush1.msra.mxu0 %v885
      %887 = vmatprep.subr.mxu0 0.0
      %v888 = vand.u32 %v213, 4294901760
      %889 = vmatpush1.msra.mxu0 %v888
      %890 = vmatprep.subr.mxu0 0.0
      %v891 = vand.u32 %v212, 4294901760
      %892 = vmatpush1.msra.mxu0 %v891
      %893 = vmatprep.subr.mxu0 0.0
      %v894 = vand.u32 %v211, 4294901760
      %895 = vmatpush1.msra.mxu0 %v894
      %896 = vmatprep.subr.mxu0 0.0
      %v897 = vand.u32 %v210, 4294901760
      %898 = vmatpush1.msra.mxu0 %v897
      %899 = vmatprep.subr.mxu0 0.0
      %v900 = vand.u32 %v209, 4294901760
      %901 = vmatpush1.msra.mxu0 %v900
      %902 = vmatprep.subr.mxu0 0.0
      %v903 = vand.u32 %v208, 4294901760
      %904 = vmatpush1.msra.mxu0 %v903
      %905 = vmatprep.subr.mxu0 0.0
      %v906 = vand.u32 %v207, 4294901760
      %907 = vmatpush1.msra.mxu0 %v906
      %908 = vmatprep.subr.mxu0 0.0
      %v909 = vand.u32 %v206, 4294901760
      %910 = vmatpush1.msra.mxu0 %v909
      %911 = vmatprep.subr.mxu0 0.0
      %v912 = vand.u32 %v205, 4294901760
      %913 = vmatpush1.msra.mxu0 %v912
      %914 = vmatprep.subr.mxu0 0.0
      %v915 = vand.u32 %v204, 4294901760
      %916 = vmatpush1.msra.mxu0 %v915
      %917 = vmatprep.subr.mxu0 0.0
      %v918 = vand.u32 %v203, 4294901760
      %919 = vmatpush1.msra.mxu0 %v918
      %920 = vmatprep.subr.mxu0 0.0
      %v921 = vand.u32 %v202, 4294901760
      %922 = vmatpush1.msra.mxu0 %v921
      %923 = vmatprep.subr.mxu0 0.0
      %v924 = vand.u32 %v201, 4294901760
      %925 = vmatpush1.msra.mxu0 %v924
      %926 = vmatprep.subr.mxu0 0.0
      %v927 = vand.u32 %v200, 4294901760
      %928 = vmatpush1.msra.mxu0 %v927
      %929 = vmatprep.subr.mxu0 0.0
      %930 = vmatpush2.msra.mxu0 0.0
      %931 = vmatprep.subr.mxu0 0.0
      %932 = vmatpush2.msra.mxu0 0.0
      %933 = vmatprep.subr.mxu0 0.0
      %934 = vmatpush2.msra.mxu0 0.0
      %935 = vmatprep.subr.mxu0 0.0
      %936 = vmatpush2.msra.mxu0 0.0
      %937 = vmatprep.subr.mxu0 0.0
      %938 = vmatpush2.msra.mxu0 0.0
      %939 = vmatprep.subr.mxu0 0.0
      %940 = vmatpush2.msra.mxu0 0.0
      %941 = vmatprep.subr.mxu0 0.0
      %942 = vmatpush2.msra.mxu0 0.0
      %943 = vmatprep.subr.mxu0 0.0
      %944 = vmatpush2.msra.mxu0 0.0
      %945 = vmatprep.subr.mxu0 0.0
      %946 = vmatpush2.msra.mxu0 0.0
      %947 = vmatprep.subr.mxu0 0.0
      %948 = vmatpush2.msra.mxu0 0.0
      %949 = vmatprep.subr.mxu0 0.0
      %950 = vmatpush2.msra.mxu0 0.0
      %951 = vmatprep.subr.mxu0 0.0
      %952 = vmatpush2.msra.mxu0 0.0
      %953 = vmatprep.subr.mxu0 0.0
      %954 = vmatpush2.msra.mxu0 0.0
      %955 = vmatprep.subr.mxu0 0.0
      %956 = vmatpush2.msra.mxu0 0.0
      %957 = vmatprep.subr.mxu0 0.0
      %958 = vmatpush2.msra.mxu0 0.0
      %959 = vmatprep.subr.mxu0 0.0
      %960 = vmatpush2.msra.mxu0 0.0
      %961 = vmatprep.mubr.f32.mxu0 0.0
      %v962 = vand.u32 %v196, 4294901760
      %963 = vmatmul.mubr.f32.gmra.mxu0 %v962
      %v964 = vpop.f32.mrf.mxu0
      %v965 = vadd.f32 %v860, %v964
      %v966 = vpop.f32.mrf.mxu0
      %967 = vmatprep.mubr.f32.mxu0 0.0
      %v968 = vand.u32 %v197, 4294901760
      %969 = vmatmul.mubr.f32.gmra.mxu0 %v968
      %v970 = vpop.f32.mrf.mxu0
      %v971 = vadd.f32 %v866, %v970
      %v972 = vpop.f32.mrf.mxu0
      %973 = vmatprep.mubr.f32.mxu0 0.0
      %v974 = vand.u32 %v198, 4294901760
      %975 = vmatmul.mubr.f32.gmra.mxu0 %v974
      %v976 = vpop.f32.mrf.mxu0
      %v977 = vadd.f32 %v872, %v976
      %v978 = vpop.f32.mrf.mxu0
      %979 = vmatprep.mubr.f32.mxu0 0.0
      %v980 = vand.u32 %v199, 4294901760
      %981 = vmatmul.mubr.f32.gmra.mxu0 %v980
      %v982 = vpop.f32.mrf.mxu0
      %v983 = vadd.f32 %v878, %v982
      %v984 = vpop.f32.mrf.mxu0
      %985 = vdwg.mxu0
      %v986 = vld [vmem:[%s188] sm:$0xff]
      %v987 = vld [vmem:[%s188 + $0x8] sm:$0xff]
      %v988 = vld [vmem:[%s188 + $0x10] sm:$0xff]
      %v989 = vld [vmem:[%s188 + $0x18] sm:$0xff]
      %v990 = vmax.f32 %v986, 1.0
      %v991 = vmax.f32 %v987, 1.0
      %v992 = vmax.f32 %v988, 1.0
      %v993 = vmax.f32 %v989, 1.0
      %v994 = vrcp.pop %v990
      %v995 = vrcp.pop %v991
      %v996 = vrcp.pop %v992
      %v997 = vrcp.pop %v993
      %v998 = vmul.f32 %v990, %v994
      %v999 = vmul.f32 %v991, %v995
      %v1000 = vmul.f32 %v992, %v996
      %v1001 = vmul.f32 %v993, %v997
      %v1002 = vsub.f32 2.0, %v998
      %v1003 = vsub.f32 2.0, %v999
      %v1004 = vsub.f32 2.0, %v1000
      %v1005 = vsub.f32 2.0, %v1001
      %v1006 = vmul.f32 %v994, %v1002
      %v1007 = vmul.f32 %v995, %v1003
      %v1008 = vmul.f32 %v996, %v1004
      %v1009 = vmul.f32 %v997, %v1005
      %v1010 = vmul.f32 %v965, %v1006
      %v1011 = vmul.f32 %v971, %v1007
      %v1012 = vmul.f32 %v977, %v1008
      %v1013 = vmul.f32 %v983, %v1009
      %vm1014 = vcmask 130048
      %1015 = vst.msk [vmem:[%s194] sm:$0xff] %vm1014, %v1010
      %1016 = vst.msk [vmem:[%s194 + $0x8] sm:$0xff] %vm1014, %v1011
      %1017 = vst.msk [vmem:[%s194 + $0x10] sm:$0xff] %vm1014, %v1012
      %1018 = vst.msk [vmem:[%s194 + $0x18] sm:$0xff] %vm1014, %v1013
      %s1019 = smul.u32 4, %s14
      %p1020 = scmp.lt.s32.totalorder %s1019, 15
      %s1021 = scalar_select %p1020, %s1019, 15
      %s1022 = smul.addr %s1021, 8
      %s1023 = scalar_lea.vmem %s3, %s1022
      // Predicated region
      $region33: #{tpu_custom_call.1} parent=31 // pred_check
        %p1024 = pneg %p105
      $region34: #{tpu_custom_call.1} parent=31 // pred_check_branch
        %1026 = sbr.rel (%p1024) target = $region36
      $region35: #{tpu_custom_call.1} parent=31 // pred_region
        %s1027 = smul.u32 4, %s14
      $region36: #{tpu_custom_call.1} parent=31 // pred_fallthru
        _
    $region32: #{tpu_custom_call.1} parent=5 // pred_fallthru
      _
    %p1028 = scmp.le.s32.totalorder 2, %s9
    // Predicated region
    $region37: #{tpu_custom_call.1} parent=5 // pred_check
      %p1029 = pneg %p1028
    $region38: #{tpu_custom_call.1} parent=5 // pred_check_branch
      %1031 = sbr.rel (%p1029) target = $region40
    $region39: #{tpu_custom_call.1} parent=5 // pred_region
      %s1032 = ssub.s32 %s9, 2
      // Predicated region
      $region41: #{tpu_custom_call.1} parent=39 // pred_check
        %p1033 = pneg %p111
      $region42: #{tpu_custom_call.1} parent=39 // pred_check_branch
        %1035 = sbr.rel (%p1033) target = $region44
      $region43: #{tpu_custom_call.1} parent=39 // pred_region
        %s1036 = smul.u32 4, %s15
        %p1037 = scmp.lt.s32.totalorder %s1036, 15
        %s1038 = scalar_select %p1037, %s1036, 15
        %s1039 = smul.addr %s1038, 8
        %s1040 = scalar_lea.vmem %s3, %s1039
      $region44: #{tpu_custom_call.1} parent=39 // pred_fallthru
        _
    $region40: #{tpu_custom_call.1} parent=5 // pred_fallthru
      _
  $region6: #{tpu_custom_call.1} parent=0 // loop_footer
    %s13 = sadd.s32 1, %s9
  $region7: #{tpu_custom_call.1} parent=0 // loop_footer_branch
    %8 = sbr.rel target = $region3
  $region8: #{tpu_custom_call.1} parent=0 // loop_exit
    _

</llo_original>
